<compile_context>
chip_gen: v6e
topology: v6e:2x2x1
jax: 0.10.0
libtpu: 0.0.40
codegen_flags: <defaults>
</compile_context>

<pallas_src>
import numpy as np
import jax
import jax.numpy as jnp
from jax import lax
from jax.experimental import pallas as pl
from jax.experimental.pallas import tpu as pltpu


def calc_coeff(iter_num, high=1.0, low=0.0, alpha=10.0, max_iter=10000.0):
    # Gradient-reversal coefficient: forward no-op, kept for semantic parity.
    return float(2.0 * (high - low) / (1.0 + np.exp(-alpha * iter_num / max_iter))
                 - (high - low) + low)


def _adv_net_kernel(x_ref, w1_ref, b1_ref, w2_ref, b2_ref, w3_ref, b3_ref,
                    o_ref, acc_ref):
    k = pl.program_id(1)

    @pl.when(k == 0)
    def _():
        acc_ref[...] = jnp.zeros_like(acc_ref)

    # Layer-1 partial product: [TB, TK] @ [TK, H] on the MXU (bf16 operands,
    # f32 accumulation into the VMEM scratch).
    acc_ref[...] += jnp.dot(x_ref[...].astype(jnp.bfloat16), w1_ref[...],
                            preferred_element_type=jnp.float32)

    @pl.when(k == pl.num_programs(1) - 1)
    def _():
        h1 = jnp.maximum(acc_ref[...] + b1_ref[...], 0.0)          # ReLU (f32, VPU)
        # TODO(synk): dropout1/dropout2 are identity in eval mode; training-mode
        # dropout masks (pltpu.prng_random_bits) are not implemented here.
        h2 = jnp.dot(h1.astype(jnp.bfloat16), w2_ref[...],
                     preferred_element_type=jnp.float32) + b2_ref[...]
        h2 = jnp.maximum(h2, 0.0)                                   # ReLU (f32, VPU)
        # Final single-unit layer contracted as [1, H] x [TB, H] -> [1, TB] so
        # the result (and the output tile) is lane-dense.
        y = lax.dot_general(w3_ref[...], h2.astype(jnp.bfloat16),
                            dimension_numbers=(((1,), (1,)), ((), ())),
                            preferred_element_type=jnp.float32) + b3_ref[...]
        o_ref[...] = jax.nn.sigmoid(y)[None].astype(o_ref.dtype)    # [1, 1, TB]


def _choose_tb(batch, preferred=1024):
    """Batch tile: multiple of 128, large enough to amortize per-grid-step
    overhead, small enough to keep >= ~4 tiles so both v7x TCs get work."""
    quarter = ((batch + 4 * 128 - 1) // (4 * 128)) * 128   # round_up(B/4, 128)
    return int(max(128, min(preferred, quarter)))


def _choose_tk(in_feature, preferred=1024):
    """K tile over in_feature: whole F when small enough for a resident W1;
    otherwise a 128-multiple that divides F (no padding on the K axis)."""
    if in_feature <= preferred:
        return in_feature
    for cand in (1024, 512, 256, 128):
        if in_feature % cand == 0:
            return cand
    return in_feature   # odd F: fall back to fully-resident W1


def adversarial_network_forward(x, params, *, tb=None, tk=None):
    """x: [B, in_feature] (bf16 or f32). Returns sigmoid output [B, 1] f32."""
    w1, b1, w2, b2, w3_row, b3 = params
    B, F = x.shape
    H = w1.shape[1]

    tb = _choose_tb(B) if tb is None else tb
    tk = _choose_tk(F) if tk is None else tk
    assert F % tk == 0, "tk must divide in_feature (no padding on the K axis)"

    nb = pl.cdiv(B, tb)   # ragged batch tail handled by Pallas edge blocks
    nk = F // tk

    # Weights / biases: constant index_map -> fetched once, VMEM-resident.
    resident = lambda a: pl.BlockSpec(a.shape, lambda i, k: (0,) * a.ndim)

    out = pl.pallas_call(
        _adv_net_kernel,
        out_shape=jax.ShapeDtypeStruct((nb, 1, tb), jnp.float32),
        grid_spec=pltpu.PrefetchScalarGridSpec(
            num_scalar_prefetch=0,
            grid=(nb, nk),
            in_specs=[
                pl.BlockSpec((tb, tk), lambda i, k: (i, k)),   # x: batch + K tiled
                pl.BlockSpec((tk, H), lambda i, k: (k, 0)),    # W1: K tiled
                resident(b1), resident(w2), resident(b2),
                resident(w3_row), resident(b3),
            ],
            out_specs=pl.BlockSpec((1, 1, tb), lambda i, k: (i, 0, 0)),
            scratch_shapes=[pltpu.VMEM((tb, H), jnp.float32)],  # layer-1 accum
        ),
        compiler_params=pltpu.CompilerParams(
            # Batch tiles across TensorCores (v7x megacore); K is a reduction.
            dimension_semantics=("parallel", "arbitrary"),
        ),
    )(x, w1, b1, w2, b2, w3_row, b3)

    # Lane-dense (nb, 1, tb) -> (B, 1); rows past B (edge-block padding) are
    # row-independent garbage and are dropped here.
    return out.reshape(nb * tb)[:B].reshape(B, 1)


def init_params(key, in_feature, hidden_size):
    """xavier_normal_ weights (nn.Linear branch of init_weights), zero biases.
    W1/W2/W3 stored [in, out]-style in bf16 (MXU operands); biases f32."""
    k1, k2, k3 = jax.random.split(key, 3)

    def xavier_normal(k, fan_in, fan_out, shape):
        std = float(np.sqrt(2.0 / (fan_in + fan_out)))
        return (std * jax.random.normal(k, shape, dtype=jnp.float32)
                ).astype(jnp.bfloat16)

    w1 = xavier_normal(k1, in_feature, hidden_size, (in_feature, hidden_size))
    b1 = jnp.zeros((1, hidden_size), dtype=jnp.float32)
    w2 = xavier_normal(k2, hidden_size, hidden_size, (hidden_size, hidden_size))
    b2 = jnp.zeros((1, hidden_size), dtype=jnp.float32)
    w3_row = xavier_normal(k3, hidden_size, 1, (1, hidden_size))
    b3 = jnp.zeros((1, 1), dtype=jnp.float32)
    return (w1, b1, w2, b2, w3_row, b3)


def reference_forward(x, params):
    """Pure-JAX reference mimicking the kernel's bf16-operand / f32-accum path."""
    w1, b1, w2, b2, w3_row, b3 = params
    xf = x.astype(jnp.bfloat16).astype(jnp.float32)
    h1 = jnp.maximum(xf @ w1.astype(jnp.float32) + b1, 0.0)
    h1 = h1.astype(jnp.bfloat16).astype(jnp.float32)
    h2 = jnp.maximum(h1 @ w2.astype(jnp.float32) + b2, 0.0)
    h2 = h2.astype(jnp.bfloat16).astype(jnp.float32)
    y = h2 @ w3_row.astype(jnp.float32).T + b3
    return jax.nn.sigmoid(y)


if __name__ == "__main__":
    batch = 320          # not a tile multiple -> exercises the edge-block tail
    in_feature = 256
    hidden_size = 128

    key = jax.random.PRNGKey(0)
    kx, kp = jax.random.split(key)
    # Upstream feature extractor assumed to emit bf16 (halves the dominant HBM
    # stream); the in-kernel bf16 cast is then a no-op.
    x = jax.random.normal(kx, (batch, in_feature),
                          dtype=jnp.float32).astype(jnp.bfloat16)
    params = init_params(kp, in_feature, hidden_size)

    _coeff = calc_coeff(0)   # gradient-reversal strength: forward no-op

    # Small explicit tiles force a (3 batch-tile x 2 K-tile) grid to exercise
    # the pipelined accumulation path; production calls use the auto defaults.
    y = adversarial_network_forward(x, params, tb=128, tk=128)
    y = jax.block_until_ready(y)

    y_ref = reference_forward(x, params)
    assert y.shape == (batch, 1)
    # bf16 MXU operands -> loosened tolerance vs the f32-math comparison.
    np.testing.assert_allclose(np.asarray(y), np.asarray(y_ref),
                               rtol=2e-2, atol=2e-2)

    print("KERNEL_OK")
</pallas_src>

<mosaic_0001>
module attributes {stable_mosaic.version = 11 : i64} {
  func.func @_adv_net_kernel(%arg0: i32, %arg1: i32, %arg2: memref<128x128xbf16, #tpu.memory_space<vmem>>, %arg3: memref<128x128xbf16, #tpu.memory_space<vmem>>, %arg4: memref<1x128xf32, #tpu.memory_space<vmem>>, %arg5: memref<128x128xbf16, #tpu.memory_space<vmem>>, %arg6: memref<1x128xf32, #tpu.memory_space<vmem>>, %arg7: memref<1x128xbf16, #tpu.memory_space<vmem>>, %arg8: memref<1x1xf32, #tpu.memory_space<vmem>>, %arg9: memref<1x1x128xf32, #tpu.memory_space<vmem>>, %arg10: memref<128x128xf32, #tpu.memory_space<vmem>>) attributes {dimension_semantics = [#tpu.dimension_semantics<parallel>, #tpu.dimension_semantics<arbitrary>], iteration_bounds = array<i64: 3, 2>, scalar_prefetch = 0 : i64, scratch_operands = 1 : i64, tpu.core_type = #tpu.core_type<tc>, window_params = [{transform_indices = @transform_0, window_bounds = array<i64: 128, 128>}, {transform_indices = @transform_1, window_bounds = array<i64: 128, 128>}, {pipeline_mode = #tpu.pipeline_mode<synchronous>, transform_indices = @transform_2, window_bounds = array<i64: 1, 128>}, {pipeline_mode = #tpu.pipeline_mode<synchronous>, transform_indices = @transform_3, window_bounds = array<i64: 128, 128>}, {pipeline_mode = #tpu.pipeline_mode<synchronous>, transform_indices = @transform_4, window_bounds = array<i64: 1, 128>}, {pipeline_mode = #tpu.pipeline_mode<synchronous>, transform_indices = @transform_5, window_bounds = array<i64: 1, 128>}, {pipeline_mode = #tpu.pipeline_mode<synchronous>, transform_indices = @transform_6, window_bounds = array<i64: 1, 1>}, {transform_indices = @transform_7, window_bounds = array<i64: 1, 1, 128>}]} {
    %c0_i32 = arith.constant 0 : i32
    %0 = arith.cmpi eq, %arg1, %c0_i32 : i32
    %1 = arith.extui %0 : i1 to i32
    %c0_i32_0 = arith.constant 0 : i32
    %2 = arith.cmpi ne, %1, %c0_i32_0 : i32
    scf.if %2 {
      %cst_9 = arith.constant 0.000000e+00 : f32
      %12 = vector.broadcast %cst_9 : f32 to vector<128x128xf32>
      %c0_10 = arith.constant 0 : index
      %c0_11 = arith.constant 0 : index
      %13 = vector.load %arg10[%c0_10, %c0_11] : memref<128x128xf32, #tpu.memory_space<vmem>>, vector<128x128xf32>
      tpu.vector_store %arg10[%c0_10, %c0_11], %12 {strides = array<i32>} : memref<128x128xf32, #tpu.memory_space<vmem>>, vector<128x128xf32>,
    } else {
    }
    %c0 = arith.constant 0 : index
    %c0_1 = arith.constant 0 : index
    %3 = vector.load %arg10[%c0, %c0_1] : memref<128x128xf32, #tpu.memory_space<vmem>>, vector<128x128xf32>
    %c0_2 = arith.constant 0 : index
    %c0_3 = arith.constant 0 : index
    %4 = vector.load %arg2[%c0_2, %c0_3] : memref<128x128xbf16, #tpu.memory_space<vmem>>, vector<128x128xbf16>
    %c0_4 = arith.constant 0 : index
    %c0_5 = arith.constant 0 : index
    %5 = vector.load %arg3[%c0_4, %c0_5] : memref<128x128xbf16, #tpu.memory_space<vmem>>, vector<128x128xbf16>
    %cst = arith.constant dense<0.000000e+00> : vector<128x128xf32>
    %6 = tpu.matmul %4, %5, %cst {dimension_numbers = #tpu.dot_dimension_numbers<[1], [0], [0], [1], [0, 0, 1, 1], [], []>} : vector<128x128xbf16>, vector<128x128xbf16>, vector<128x128xf32> -> vector<128x128xf32>
    %7 = arith.addf %3, %6 : vector<128x128xf32>
    %c0_6 = arith.constant 0 : index
    %c0_7 = arith.constant 0 : index
    %8 = vector.load %arg10[%c0_6, %c0_7] : memref<128x128xf32, #tpu.memory_space<vmem>>, vector<128x128xf32>
    tpu.vector_store %arg10[%c0_6, %c0_7], %7 {strides = array<i32>} : memref<128x128xf32, #tpu.memory_space<vmem>>, vector<128x128xf32>,
    %c1_i32 = arith.constant 1 : i32
    %9 = arith.cmpi eq, %arg1, %c1_i32 : i32
    %10 = arith.extui %9 : i1 to i32
    %c0_i32_8 = arith.constant 0 : i32
    %11 = arith.cmpi ne, %10, %c0_i32_8 : i32
    scf.if %11 {
      %c0_9 = arith.constant 0 : index
      %c0_10 = arith.constant 0 : index
      %12 = vector.load %arg10[%c0_9, %c0_10] : memref<128x128xf32, #tpu.memory_space<vmem>>, vector<128x128xf32>
      %c0_11 = arith.constant 0 : index
      %c0_12 = arith.constant 0 : index
      %13 = vector.load %arg4[%c0_11, %c0_12] : memref<1x128xf32, #tpu.memory_space<vmem>>, vector<1x128xf32>
      %14 = vector.broadcast %13 : vector<1x128xf32> to vector<128x128xf32>
      %15 = arith.addf %12, %14 : vector<128x128xf32>
      %cst_13 = arith.constant 0.000000e+00 : f32
      %16 = vector.broadcast %cst_13 : f32 to vector<128x128xf32>
      %17 = arith.maximumf %15, %16 : vector<128x128xf32>
      %18 = arith.truncf %17 : vector<128x128xf32> to vector<128x128xbf16>
      %c0_14 = arith.constant 0 : index
      %c0_15 = arith.constant 0 : index
      %19 = vector.load %arg5[%c0_14, %c0_15] : memref<128x128xbf16, #tpu.memory_space<vmem>>, vector<128x128xbf16>
      %cst_16 = arith.constant dense<0.000000e+00> : vector<128x128xf32>
      %20 = tpu.matmul %18, %19, %cst_16 {dimension_numbers = #tpu.dot_dimension_numbers<[1], [0], [0], [1], [0, 0, 1, 1], [], []>} : vector<128x128xbf16>, vector<128x128xbf16>, vector<128x128xf32> -> vector<128x128xf32>
      %c0_17 = arith.constant 0 : index
      %c0_18 = arith.constant 0 : index
      %21 = vector.load %arg6[%c0_17, %c0_18] : memref<1x128xf32, #tpu.memory_space<vmem>>, vector<1x128xf32>
      %22 = vector.broadcast %21 : vector<1x128xf32> to vector<128x128xf32>
      %23 = arith.addf %20, %22 : vector<128x128xf32>
      %cst_19 = arith.constant 0.000000e+00 : f32
      %24 = vector.broadcast %cst_19 : f32 to vector<128x128xf32>
      %25 = arith.maximumf %23, %24 : vector<128x128xf32>
      %c0_20 = arith.constant 0 : index
      %c0_21 = arith.constant 0 : index
      %26 = vector.load %arg7[%c0_20, %c0_21] : memref<1x128xbf16, #tpu.memory_space<vmem>>, vector<1x128xbf16>
      %27 = arith.truncf %25 : vector<128x128xf32> to vector<128x128xbf16>
      %cst_22 = arith.constant dense<0.000000e+00> : vector<1x128xf32>
      %28 = tpu.matmul %26, %27, %cst_22 {dimension_numbers = #tpu.dot_dimension_numbers<[1], [1], [0], [0], [0, 0, 1, 0], [], []>} : vector<1x128xbf16>, vector<128x128xbf16>, vector<1x128xf32> -> vector<1x128xf32>
      %c0_23 = arith.constant 0 : index
      %c0_24 = arith.constant 0 : index
      %29 = vector.load %arg8[%c0_23, %c0_24] : memref<1x1xf32, #tpu.memory_space<vmem>>, vector<1x1xf32>
      %30 = vector.broadcast %29 : vector<1x1xf32> to vector<1x128xf32>
      %31 = arith.addf %28, %30 : vector<1x128xf32>
      %32 = arith.negf %31 : vector<1x128xf32>
      %33 = math.exp %32 : vector<1x128xf32>
      %cst_25 = arith.constant 1.000000e+00 : f32
      %34 = vector.broadcast %cst_25 : f32 to vector<1x128xf32>
      %35 = arith.addf %34, %33 : vector<1x128xf32>
      %36 = arith.divf %34, %35 : vector<1x128xf32>
      %37 = vector.shape_cast %36 : vector<1x128xf32> to vector<1x1x128xf32>
      %c0_26 = arith.constant 0 : index
      %c0_27 = arith.constant 0 : index
      %c0_28 = arith.constant 0 : index
      %38 = vector.load %arg9[%c0_26, %c0_27, %c0_28] : memref<1x1x128xf32, #tpu.memory_space<vmem>>, vector<1x1x128xf32>
      tpu.vector_store %arg9[%c0_26, %c0_27, %c0_28], %37 {strides = array<i32>} : memref<1x1x128xf32, #tpu.memory_space<vmem>>, vector<1x1x128xf32>,
    } else {
    }
    return
  }
  func.func @transform_0(%arg0: i32, %arg1: i32) -> (i32, i32) {
    %c0_i32 = arith.constant 0 : i32
    return %arg0, %arg1 : i32, i32
  }
  func.func @transform_1(%arg0: i32, %arg1: i32) -> (i32, i32) {
    %c0_i32 = arith.constant 0 : i32
    %c0_i32_0 = arith.constant 0 : i32
    return %arg1, %c0_i32 : i32, i32
  }
  func.func @transform_2(%arg0: i32, %arg1: i32) -> (i32, i32) {
    %c0_i32 = arith.constant 0 : i32
    %c0_i32_0 = arith.constant 0 : i32
    %c0_i32_1 = arith.constant 0 : i32
    return %c0_i32, %c0_i32_0 : i32, i32
  }
  func.func @transform_3(%arg0: i32, %arg1: i32) -> (i32, i32) {
    %c0_i32 = arith.constant 0 : i32
    %c0_i32_0 = arith.constant 0 : i32
    %c0_i32_1 = arith.constant 0 : i32
    return %c0_i32, %c0_i32_0 : i32, i32
  }
  func.func @transform_4(%arg0: i32, %arg1: i32) -> (i32, i32) {
    %c0_i32 = arith.constant 0 : i32
    %c0_i32_0 = arith.constant 0 : i32
    %c0_i32_1 = arith.constant 0 : i32
    return %c0_i32, %c0_i32_0 : i32, i32
  }
  func.func @transform_5(%arg0: i32, %arg1: i32) -> (i32, i32) {
    %c0_i32 = arith.constant 0 : i32
    %c0_i32_0 = arith.constant 0 : i32
    %c0_i32_1 = arith.constant 0 : i32
    return %c0_i32, %c0_i32_0 : i32, i32
  }
  func.func @transform_6(%arg0: i32, %arg1: i32) -> (i32, i32) {
    %c0_i32 = arith.constant 0 : i32
    %c0_i32_0 = arith.constant 0 : i32
    %c0_i32_1 = arith.constant 0 : i32
    return %c0_i32, %c0_i32_0 : i32, i32
  }
  func.func @transform_7(%arg0: i32, %arg1: i32) -> (i32, i32, i32) {
    %c0_i32 = arith.constant 0 : i32
    %c0_i32_0 = arith.constant 0 : i32
    %c0_i32_1 = arith.constant 0 : i32
    return %arg0, %c0_i32, %c0_i32_0 : i32, i32, i32
  }
}

</mosaic_0001>

<llo_original>
// kernel: tpu_custom_call.1
$region0: #{tpu_custom_call.1}
  #allocation0 [shape = 'u32[]', space=smem, size = 0x4, offset = 0x4, fixed_abs, tag = 'smem constant byte address 0x4 - core index']
  #allocation1 [shape = 'u32[144,128]{1,0:T(1,128)}', space=vmem, size = 0x12000, scoped, tag = 'internal scratch']
  #allocation2 [shape = 'f32[128,128]{1,0:T(8,128)}', space=vmem, size = 0x10000, scoped, tag = 'scratch operand']
  #allocation3 [shape = 'f32[1,1]{1,0:T(1,128)S(1)}', space=vmem, size = 0x200, scoped, tag = 'scoped memory for tpu_custom_call.1']
  %s0 = inlined_call_operand.hbm [shape: bf16[320,256], index: 0, kind: input, shape index: {}]
  %s1 = inlined_call_operand.hbm [shape: bf16[256,128], index: 1, kind: input, shape index: {}]
  %s2 = inlined_call_operand.vmem [shape: f32[1,128], index: 2, kind: input, shape index: {}]
  %s3 = inlined_call_operand.hbm [shape: bf16[128,128], index: 3, kind: input, shape index: {}]
  %s4 = inlined_call_operand.vmem [shape: f32[1,128], index: 4, kind: input, shape index: {}]
  %s5 = inlined_call_operand.vmem [shape: bf16[1,128], index: 5, kind: input, shape index: {}]
  %s6 = inlined_call_operand.<no memory space> [shape: f32[1,1], index: 6, kind: input, shape index: {}]
  %s7 = inlined_call_operand.hbm [shape: f32[3,1,128], index: 7, kind: output, shape index: {}]
  %s8 = sld [smem:[#allocation0]]
  $region81: #{tpu_custom_call.1} parent=0
    _
  %s10 = ssub.s32 1, %s8
  %s11 = scalar_select 0, %s10, %s8
  %v12 = vstv %s6
  %13 = vst [vmem:[#allocation3] sm:$0x1] %v12
  $region1: #{tpu_custom_call.1} parent=0
    #allocation4 [shape = 'u8[65536]{0}', space=vmem, size = 0x10000, scoped, tag = 'input window, operand 0']
    #allocation5 [shape = 's32[2]{0}', space=sflag, size = 0x8, scoped, tag = 'scoped memory for tpu_custom_call.1']
    #allocation6 [shape = 's32[2]{0}', space=sflag, size = 0x8, scoped, tag = 'scoped memory for tpu_custom_call.1']
    #allocation7 [shape = 'u8[65536]{0}', space=vmem, size = 0x10000, scoped, tag = 'input window, operand 1']
    #allocation8 [shape = 's32[2]{0}', space=sflag, size = 0x8, scoped, tag = 'scoped memory for tpu_custom_call.1']
    #allocation9 [shape = 'u8[32768]{0}', space=vmem, size = 0x8000, scoped, tag = 'input window, operand 3, single buffered']
    #allocation10 [shape = 'u8[1024]{0}', space=vmem, size = 0x400, scoped, tag = 'output window, operand 0']
    %14 = vsyncpa [#allocation5], 0
    %s15 = scalar_lea.sflag [#allocation5], 1
    %16 = vsyncpa %s15, 0
    %17 = vsyncpa [#allocation8], 0
    %s18 = scalar_lea.sflag [#allocation8], 1
    %19 = vsyncpa %s18, 0
    %20 = vsyncpa [#allocation6], 0
    %s21 = scalar_lea.sflag [#allocation6], 1
    %22 = vsyncpa %s21, 0
    loop: start=0, step=1, limit=8
    $region2: #{tpu_custom_call.1} parent=1 // loop_pre_header
      _
    $region3: #{tpu_custom_call.1} parent=1 // loop_header
      %s24 = sphi 0, %s28
      %p25 = scmp.ge.s32.totalorder %s24, 8
      %s31 = sphi 0, %s43
      %s32 = sphi 0, %s39
      %s33 = sphi 0, %s31
      %s34 = sphi 0, %s32
      %s35 = sphi 0, %s33
      %s36 = sphi 0, %s34
      %s48 = sphi 0, %s50
      %s51 = sphi 0, %s48
      %s52 = sphi 0, %s51
      %s68 = sphi 0, %s52
      %s74 = sphi 0, %s76
      %s77 = sphi 0, %s74
      %s78 = sphi 0, %s77
      %s94 = sphi 0, %s78
      %s98 = sphi 0, %s98
      %s100 = sphi 0, %s98
      %s101 = sphi 0, %s100
      %s115 = sphi 0, %s101
      %s119 = sphi 0, %s119
      %s121 = sphi 0, %s119
      %s122 = sphi 0, %s121
      %s136 = sphi 0, %s122
      %s140 = sphi 0, %s140
      %s142 = sphi 0, %s140
      %s143 = sphi 0, %s142
      %s157 = sphi 0, %s143
      %s161 = sphi 0, %s161
      %s163 = sphi 0, %s161
      %s164 = sphi 0, %s163
      %s178 = sphi 0, %s164
      %s182 = sphi 0, %s182
      %s184 = sphi 0, %s182
      %s185 = sphi 0, %s184
      %s199 = sphi 0, %s185
      %s205 = sphi 0, %s207
      %s208 = sphi 0, %s205
      %s209 = sphi 0, %s208
      %s225 = sphi 0, %s209
    $region4: #{tpu_custom_call.1} parent=1 // loop_header_branch
      %27 = sbr.rel (%p25) target = $region8
    $region5: #{tpu_custom_call.1} parent=1 // loop_body
      %s29 = ssub.s32 %s24, 1
      %s30 = ssub.s32 %s24, 2
      %s37 = sadd.s32 1, %s32
      %p38 = scmp.ge.s32.totalorder %s37, 2
      %s39 = scalar_select %p38, 0, %s37
      %s40 = sadd.s32 1, %s31
      %s41 = scalar_select %p38, %s40, %s31
      %p42 = scmp.ge.s32.totalorder %s41, 3
      %s43 = scalar_select %p42, 0, %s41
      %s44 = ssub.s32 %s31, %s43
      %s45 = ssub.s32 %s32, %s39
      %s46 = sor.u32 %s44, %s45
      %p47 = scmp.eq.s32.totalorder %s46, 0
      %s49 = sadd.s32 %s48, 1
      %s50 = scalar_select %p47, %s48, %s49
      %p53 = pneg %p47
      %p54 = scmp.eq.s32.totalorder %s24, 5
      %p55 = por %p53, %p54
      %p56 = scmp.ne.s32.totalorder %s48, %s51
      %p57 = scmp.eq.s32.totalorder %s24, 0
      %p58 = por %p56, %p57
      %p59 = scmp.ne.s32.totalorder %s48, %s51
      %p60 = scmp.eq.s32.totalorder %s29, 5
      %p61 = por %p59, %p60
      %p62 = scmp.ne.s32.totalorder %s51, %s52
      %p63 = scmp.eq.s32.totalorder %s29, 0
      %p64 = por %p62, %p63
      %p65 = scmp.ne.s32.totalorder %s51, %s52
      %p66 = scmp.eq.s32.totalorder %s30, 5
      %p67 = por %p65, %p66
      %p69 = scmp.ne.s32.totalorder %s52, %s68
      %p70 = scmp.eq.s32.totalorder %s30, 0
      %p71 = por %p69, %p70
      %s72 = ssub.s32 %s32, %s39
      %p73 = scmp.eq.s32.totalorder %s72, 0
      %s75 = sadd.s32 %s74, 1
      %s76 = scalar_select %p73, %s74, %s75
      %p79 = pneg %p73
      %p80 = scmp.eq.s32.totalorder %s24, 5
      %p81 = por %p79, %p80
      %p82 = scmp.ne.s32.totalorder %s74, %s77
      %p83 = scmp.eq.s32.totalorder %s24, 0
      %p84 = por %p82, %p83
      %p85 = scmp.ne.s32.totalorder %s74, %s77
      %p86 = scmp.eq.s32.totalorder %s29, 5
      %p87 = por %p85, %p86
      %p88 = scmp.ne.s32.totalorder %s77, %s78
      %p89 = scmp.eq.s32.totalorder %s29, 0
      %p90 = por %p88, %p89
      %p91 = scmp.ne.s32.totalorder %s77, %s78
      %p92 = scmp.eq.s32.totalorder %s30, 5
      %p93 = por %p91, %p92
      %p95 = scmp.ne.s32.totalorder %s78, %s94
      %p96 = scmp.eq.s32.totalorder %s30, 0
      %p97 = por %p95, %p96
      %s99 = sadd.s32 %s98, 1
      %p102 = scmp.eq.s32.totalorder %s24, 5
      %p103 = scmp.ne.s32.totalorder %s98, %s100
      %p104 = scmp.eq.s32.totalorder %s24, 0
      %p105 = por %p103, %p104
      %p106 = scmp.ne.s32.totalorder %s98, %s100
      %p107 = scmp.eq.s32.totalorder %s29, 5
      %p108 = por %p106, %p107
      %p109 = scmp.ne.s32.totalorder %s100, %s101
      %p110 = scmp.eq.s32.totalorder %s29, 0
      %p111 = por %p109, %p110
      %p112 = scmp.ne.s32.totalorder %s100, %s101
      %p113 = scmp.eq.s32.totalorder %s30, 5
      %p114 = por %p112, %p113
      %p116 = scmp.ne.s32.totalorder %s101, %s115
      %p117 = scmp.eq.s32.totalorder %s30, 0
      %p118 = por %p116, %p117
      %s120 = sadd.s32 %s119, 1
      %p123 = scmp.eq.s32.totalorder %s24, 5
      %p124 = scmp.ne.s32.totalorder %s119, %s121
      %p125 = scmp.eq.s32.totalorder %s24, 0
      %p126 = por %p124, %p125
      %p127 = scmp.ne.s32.totalorder %s119, %s121
      %p128 = scmp.eq.s32.totalorder %s29, 5
      %p129 = por %p127, %p128
      %p130 = scmp.ne.s32.totalorder %s121, %s122
      %p131 = scmp.eq.s32.totalorder %s29, 0
      %p132 = por %p130, %p131
      %p133 = scmp.ne.s32.totalorder %s121, %s122
      %p134 = scmp.eq.s32.totalorder %s30, 5
      %p135 = por %p133, %p134
      %p137 = scmp.ne.s32.totalorder %s122, %s136
      %p138 = scmp.eq.s32.totalorder %s30, 0
      %p139 = por %p137, %p138
      %s141 = sadd.s32 %s140, 1
      %p144 = scmp.eq.s32.totalorder %s24, 5
      %p145 = scmp.ne.s32.totalorder %s140, %s142
      %p146 = scmp.eq.s32.totalorder %s24, 0
      %p147 = por %p145, %p146
      %p148 = scmp.ne.s32.totalorder %s140, %s142
      %p149 = scmp.eq.s32.totalorder %s29, 5
      %p150 = por %p148, %p149
      %p151 = scmp.ne.s32.totalorder %s142, %s143
      %p152 = scmp.eq.s32.totalorder %s29, 0
      %p153 = por %p151, %p152
      %p154 = scmp.ne.s32.totalorder %s142, %s143
      %p155 = scmp.eq.s32.totalorder %s30, 5
      %p156 = por %p154, %p155
      %p158 = scmp.ne.s32.totalorder %s143, %s157
      %p159 = scmp.eq.s32.totalorder %s30, 0
      %p160 = por %p158, %p159
      %s162 = sadd.s32 %s161, 1
      %p165 = scmp.eq.s32.totalorder %s24, 5
      %p166 = scmp.ne.s32.totalorder %s161, %s163
      %p167 = scmp.eq.s32.totalorder %s24, 0
      %p168 = por %p166, %p167
      %p169 = scmp.ne.s32.totalorder %s161, %s163
      %p170 = scmp.eq.s32.totalorder %s29, 5
      %p171 = por %p169, %p170
      %p172 = scmp.ne.s32.totalorder %s163, %s164
      %p173 = scmp.eq.s32.totalorder %s29, 0
      %p174 = por %p172, %p173
      %p175 = scmp.ne.s32.totalorder %s163, %s164
      %p176 = scmp.eq.s32.totalorder %s30, 5
      %p177 = por %p175, %p176
      %p179 = scmp.ne.s32.totalorder %s164, %s178
      %p180 = scmp.eq.s32.totalorder %s30, 0
      %p181 = por %p179, %p180
      %s183 = sadd.s32 %s182, 1
      %p186 = scmp.eq.s32.totalorder %s24, 5
      %p187 = scmp.ne.s32.totalorder %s182, %s184
      %p188 = scmp.eq.s32.totalorder %s24, 0
      %p189 = por %p187, %p188
      %p190 = scmp.ne.s32.totalorder %s182, %s184
      %p191 = scmp.eq.s32.totalorder %s29, 5
      %p192 = por %p190, %p191
      %p193 = scmp.ne.s32.totalorder %s184, %s185
      %p194 = scmp.eq.s32.totalorder %s29, 0
      %p195 = por %p193, %p194
      %p196 = scmp.ne.s32.totalorder %s184, %s185
      %p197 = scmp.eq.s32.totalorder %s30, 5
      %p198 = por %p196, %p197
      %p200 = scmp.ne.s32.totalorder %s185, %s199
      %p201 = scmp.eq.s32.totalorder %s30, 0
      %p202 = por %p200, %p201
      %s203 = ssub.s32 %s31, %s43
      %p204 = scmp.eq.s32.totalorder %s203, 0
      %s206 = sadd.s32 %s205, 1
      %s207 = scalar_select %p204, %s205, %s206
      %p210 = pneg %p204
      %p211 = scmp.eq.s32.totalorder %s24, 5
      %p212 = por %p210, %p211
      %p213 = scmp.ne.s32.totalorder %s205, %s208
      %p214 = scmp.eq.s32.totalorder %s24, 0
      %p215 = por %p213, %p214
      %p216 = scmp.ne.s32.totalorder %s205, %s208
      %p217 = scmp.eq.s32.totalorder %s29, 5
      %p218 = por %p216, %p217
      %p219 = scmp.ne.s32.totalorder %s208, %s209
      %p220 = scmp.eq.s32.totalorder %s29, 0
      %p221 = por %p219, %p220
      %p222 = scmp.ne.s32.totalorder %s208, %s209
      %p223 = scmp.eq.s32.totalorder %s30, 5
      %p224 = por %p222, %p223
      %p226 = scmp.ne.s32.totalorder %s209, %s225
      %p227 = scmp.eq.s32.totalorder %s30, 0
      %p228 = por %p226, %p227
      %p229 = scmp.le.s32.totalorder 1, %s24
      %p230 = scmp.lt.s32.totalorder %s24, 7
      %p231 = pnand %p229, %p230
      %p232 = pneg %p231
      // Predicated region
      $region9: #{tpu_custom_call.1} parent=5 // pred_check
        _
      $region10: #{tpu_custom_call.1} parent=5 // pred_check_branch
        %234 = sbr.rel (%p231) target = $region12
      $region11: #{tpu_custom_call.1} parent=5 // pred_region
        %s235 = ssub.s32 %s24, 1
        // Predicated region
        $region13: #{tpu_custom_call.1} parent=11 // pred_check
          %p236 = pneg %p111
        $region14: #{tpu_custom_call.1} parent=11 // pred_check_branch
          %238 = sbr.rel (%p236) target = $region16
        $region15: #{tpu_custom_call.1} parent=11 // pred_region
          _
        $region16: #{tpu_custom_call.1} parent=11 // pred_fallthru
          _
        // Predicated region
        $region17: #{tpu_custom_call.1} parent=11 // pred_check
          %p239 = pneg %p132
        $region18: #{tpu_custom_call.1} parent=11 // pred_check_branch
          %241 = sbr.rel (%p239) target = $region20
        $region19: #{tpu_custom_call.1} parent=11 // pred_region
          %s243 = ssub.s32 1024, 1024
          %244 = vsyncadd [#allocation8], %s243
          %s245 = sshll.u32 [#allocation9], 4
          %s246 = int_to_ptr.vmem [resolvable:$true] %s245
          %251 = dma.hbm_to_vmem [thread:$0]  %s3, 1024, %s246, [#allocation8], 64, 64, 4
        $region20: #{tpu_custom_call.1} parent=11 // pred_fallthru
          _
        // Predicated region
        $region21: #{tpu_custom_call.1} parent=11 // pred_check
          %p252 = pneg %p153
        $region22: #{tpu_custom_call.1} parent=11 // pred_check_branch
          %254 = sbr.rel (%p252) target = $region24
        $region23: #{tpu_custom_call.1} parent=11 // pred_region
          _
        $region24: #{tpu_custom_call.1} parent=11 // pred_fallthru
          _
        // Predicated region
        $region25: #{tpu_custom_call.1} parent=11 // pred_check
          %p255 = pneg %p174
        $region26: #{tpu_custom_call.1} parent=11 // pred_check_branch
          %257 = sbr.rel (%p255) target = $region28
        $region27: #{tpu_custom_call.1} parent=11 // pred_region
          _
        $region28: #{tpu_custom_call.1} parent=11 // pred_fallthru
          _
        // Predicated region
        $region29: #{tpu_custom_call.1} parent=11 // pred_check
          %p258 = pneg %p195
        $region30: #{tpu_custom_call.1} parent=11 // pred_check_branch
          %260 = sbr.rel (%p258) target = $region32
        $region31: #{tpu_custom_call.1} parent=11 // pred_region
          _
        $region32: #{tpu_custom_call.1} parent=11 // pred_fallthru
          _
      $region12: #{tpu_custom_call.1} parent=5 // pred_fallthru
        _
      %p261 = scmp.lt.s32.totalorder %s24, 6
      // Predicated region
      $region33: #{tpu_custom_call.1} parent=5 // pred_check
        %p262 = pneg %p261
      $region34: #{tpu_custom_call.1} parent=5 // pred_check_branch
        %264 = sbr.rel (%p262) target = $region36
      $region35: #{tpu_custom_call.1} parent=5 // pred_region
        // Predicated region
        $region37: #{tpu_custom_call.1} parent=35 // pred_check
          %p265 = pneg %p58
        $region38: #{tpu_custom_call.1} parent=35 // pred_check_branch
          %267 = sbr.rel (%p265) target = $region40
        $region39: #{tpu_custom_call.1} parent=35 // pred_region
          %s268 = sand.u32 %s48, 1
          %s269 = scalar_lea.sflag [#allocation5], %s268
          %s270 = sand.u32 %s48, 1
          %s271 = smul.addr %s270, 64
          %s272 = scalar_lea.vmem [#allocation4], %s271
          %s273 = smul.u32 16, %s31
          %s274 = ssub.s32 40, %s273
          %p275 = scmp.lt.s32.totalorder %s274, 16
          %s276 = scalar_select %p275, %s274, 16
          %s277 = smul.u32 64, %s276
          %s279 = ssub.s32 1024, %s277
          %280 = vsyncadd %s269, %s279
          %p281 = scmp.ne.s32.totalorder 0, %s277
          %s282 = smul.addr %s273, 2
          %s283 = sadd.s32 %s32, %s282
          %s284 = smul.addr %s283, 64
          %s285 = scalar_lea.hbm %s0, %s284
          %s286 = smul.u32 4, %s276
          %s287 = sshll.u32 %s272, 4
          %s288 = int_to_ptr.vmem [resolvable:$true] %s287
          %s289 = sshll.u32 %s286, 4
          %293 = dma.hbm_to_vmem [thread:$0]  (%p281), %s285, %s289, %s288, %s269, 128, 64, 4
        $region40: #{tpu_custom_call.1} parent=35 // pred_fallthru
          _
        // Predicated region
        $region41: #{tpu_custom_call.1} parent=35 // pred_check
          %p294 = pneg %p84
        $region42: #{tpu_custom_call.1} parent=35 // pred_check_branch
          %296 = sbr.rel (%p294) target = $region44
        $region43: #{tpu_custom_call.1} parent=35 // pred_region
          %s297 = sand.u32 %s24, 1
          %s298 = scalar_lea.sflag [#allocation8], %s297
          %s299 = sand.u32 %s74, 1
          %s300 = smul.addr %s299, 64
          %s301 = scalar_lea.vmem [#allocation7], %s300
          %s302 = smul.u32 16, %s32
          %s304 = ssub.s32 1024, 1024
          %305 = vsyncadd %s298, %s304
          %s306 = smul.addr %s302, 64
          %s307 = scalar_lea.hbm %s1, %s306
          %s308 = sshll.u32 %s301, 4
          %s309 = int_to_ptr.vmem [resolvable:$true] %s308
          %314 = dma.hbm_to_vmem [thread:$0]  %s307, 1024, %s309, %s298, 64, 64, 4
        $region44: #{tpu_custom_call.1} parent=35 // pred_fallthru
          _
      $region36: #{tpu_custom_call.1} parent=5 // pred_fallthru
        _
      %p315 = scmp.le.s32.totalorder 1, %s24
      %p316 = scmp.lt.s32.totalorder %s24, 7
      %p317 = pnand %p315, %p316
      %p318 = pneg %p317
      // Predicated region
      $region45: #{tpu_custom_call.1} parent=5 // pred_check
        _
      $region46: #{tpu_custom_call.1} parent=5 // pred_check_branch
        %320 = sbr.rel (%p317) target = $region48
      $region47: #{tpu_custom_call.1} parent=5 // pred_region
        %s321 = ssub.s32 %s24, 1
        %s322 = sand.u32 %s51, 1
        %s323 = scalar_lea.sflag [#allocation5], %s322
        %s324 = sand.u32 %s51, 1
        %s325 = smul.addr %s324, 64
        %s326 = scalar_lea.vmem [#allocation4], %s325
        // Predicated region
        $region49: #{tpu_custom_call.1} parent=47 // pred_check
          %p327 = pneg %p64
        $region50: #{tpu_custom_call.1} parent=47 // pred_check_branch
          %329 = sbr.rel (%p327) target = $region52
        $region51: #{tpu_custom_call.1} parent=47 // pred_region
          %330 = dma.done %s323, 1024
        $region52: #{tpu_custom_call.1} parent=47 // pred_fallthru
          _
        %s331 = sand.u32 %s29, 1
        %s332 = scalar_lea.sflag [#allocation8], %s331
        %s333 = sand.u32 %s77, 1
        %s334 = smul.addr %s333, 64
        %s335 = scalar_lea.vmem [#allocation7], %s334
        // Predicated region
        $region53: #{tpu_custom_call.1} parent=47 // pred_check
          %p336 = pneg %p90
        $region54: #{tpu_custom_call.1} parent=47 // pred_check_branch
          %338 = sbr.rel (%p336) target = $region56
        $region55: #{tpu_custom_call.1} parent=47 // pred_region
          %339 = dma.done %s332, 1024
        $region56: #{tpu_custom_call.1} parent=47 // pred_fallthru
          _
        // Predicated region
        $region57: #{tpu_custom_call.1} parent=47 // pred_check
          %p340 = pneg %p132
        $region58: #{tpu_custom_call.1} parent=47 // pred_check_branch
          %342 = sbr.rel (%p340) target = $region60
        $region59: #{tpu_custom_call.1} parent=47 // pred_region
          %343 = dma.done [#allocation8], 1024
        $region60: #{tpu_custom_call.1} parent=47 // pred_fallthru
          _
        %s344 = sand.u32 %s51, 1
        %s345 = scalar_lea.sflag [#allocation5], %s344
        %s346 = sand.u32 %s51, 1
        %s347 = smul.addr %s346, 64
        %s348 = scalar_lea.vmem [#allocation4], %s347
        %p349 = pneg %p64
        %p350 = pneg %p61
        %s351 = sand.u32 %s29, 1
        %s352 = scalar_lea.sflag [#allocation8], %s351
        %s353 = sand.u32 %s77, 1
        %s354 = smul.addr %s353, 64
        %s355 = scalar_lea.vmem [#allocation7], %s354
        %p356 = pneg %p90
        %p357 = pneg %p87
        %p358 = pneg %p111
        %p359 = pneg %p108
        %p360 = pneg %p132
        %p361 = pneg %p129
        %p362 = pneg %p153
        %p363 = pneg %p150
        %p364 = pneg %p174
        %p365 = pneg %p171
        %p366 = pneg %p195
        %p367 = pneg %p192
        %p368 = pneg %p221
        %p369 = pneg %p218
        %s370 = sand.u32 %s208, 1
        %s371 = scalar_lea.sflag [#allocation6], %s370
        %s372 = sand.u32 %s208, 1
        %s373 = scalar_lea.vmem [#allocation10], %s372
        %s374 = smul.u32 16, %s33
        %s375 = ssub.s32 40, %s374
        %p376 = scmp.lt.s32.totalorder %s375, 16
        %s377 = scalar_select %p376, %s375, 16
        %s378 = smul.u32 64, %s377
        %s379 = smul.u32 16, %s34
        %p381 = scmp.eq.s32.totalorder %s34, 0
        // Predicated region
        $region61: #{tpu_custom_call.1} parent=47 // pred_check
          %p382 = pneg %p381
        $region62: #{tpu_custom_call.1} parent=47 // pred_check_branch
          %384 = sbr.rel (%p382) target = $region64
        $region63: #{tpu_custom_call.1} parent=47 // pred_region
          %385 = vst [vmem:[#allocation2] sm:$0xff] 0.0
          %386 = vst [vmem:[#allocation2 + $0x8] sm:$0xff] 0.0
          %387 = vst [vmem:[#allocation2 + $0x10] sm:$0xff] 0.0
          %388 = vst [vmem:[#allocation2 + $0x18] sm:$0xff] 0.0
          %389 = vst [vmem:[#allocation2 + $0x20] sm:$0xff] 0.0
          %390 = vst [vmem:[#allocation2 + $0x28] sm:$0xff] 0.0
          %391 = vst [vmem:[#allocation2 + $0x30] sm:$0xff] 0.0
          %392 = vst [vmem:[#allocation2 + $0x38] sm:$0xff] 0.0
          %393 = vst [vmem:[#allocation2 + $0x40] sm:$0xff] 0.0
          %394 = vst [vmem:[#allocation2 + $0x48] sm:$0xff] 0.0
          %395 = vst [vmem:[#allocation2 + $0x50] sm:$0xff] 0.0
          %396 = vst [vmem:[#allocation2 + $0x58] sm:$0xff] 0.0
          %397 = vst [vmem:[#allocation2 + $0x60] sm:$0xff] 0.0
          %398 = vst [vmem:[#allocation2 + $0x68] sm:$0xff] 0.0
          %399 = vst [vmem:[#allocation2 + $0x70] sm:$0xff] 0.0
          %400 = vst [vmem:[#allocation2 + $0x78] sm:$0xff] 0.0
        $region64: #{tpu_custom_call.1} parent=47 // pred_fallthru
          _
        %v401 = vld [vmem:[#allocation2] sm:$0xff]
        %v402 = vld [vmem:[#allocation2 + $0x8] sm:$0xff]
        %v403 = vld [vmem:[#allocation2 + $0x10] sm:$0xff]
        %v404 = vld [vmem:[#allocation2 + $0x18] sm:$0xff]
        %v405 = vld [vmem:[#allocation2 + $0x20] sm:$0xff]
        %v406 = vld [vmem:[#allocation2 + $0x28] sm:$0xff]
        %v407 = vld [vmem:[#allocation2 + $0x30] sm:$0xff]
        %v408 = vld [vmem:[#allocation2 + $0x38] sm:$0xff]
        %v409 = vld [vmem:[#allocation2 + $0x40] sm:$0xff]
        %v410 = vld [vmem:[#allocation2 + $0x48] sm:$0xff]
        %v411 = vld [vmem:[#allocation2 + $0x50] sm:$0xff]
        %v412 = vld [vmem:[#allocation2 + $0x58] sm:$0xff]
        %v413 = vld [vmem:[#allocation2 + $0x60] sm:$0xff]
        %v414 = vld [vmem:[#allocation2 + $0x68] sm:$0xff]
        %v415 = vld [vmem:[#allocation2 + $0x70] sm:$0xff]
        %v416 = vld [vmem:[#allocation2 + $0x78] sm:$0xff]
        %v417 = vld [vmem:[%s326] sm:$0xf]
        %v418 = vld [vmem:[%s326 + $0x4] sm:$0xf]
        %v419 = vld [vmem:[%s326 + $0x8] sm:$0xf]
        %v420 = vld [vmem:[%s326 + $0xc] sm:$0xf]
        %v421 = vld [vmem:[%s326 + $0x10] sm:$0xf]
        %v422 = vld [vmem:[%s326 + $0x14] sm:$0xf]
        %v423 = vld [vmem:[%s326 + $0x18] sm:$0xf]
        %v424 = vld [vmem:[%s326 + $0x1c] sm:$0xf]
        %v425 = vld [vmem:[%s326 + $0x20] sm:$0xf]
        %v426 = vld [vmem:[%s326 + $0x24] sm:$0xf]
        %v427 = vld [vmem:[%s326 + $0x28] sm:$0xf]
        %v428 = vld [vmem:[%s326 + $0x2c] sm:$0xf]
        %v429 = vld [vmem:[%s326 + $0x30] sm:$0xf]
        %v430 = vld [vmem:[%s326 + $0x34] sm:$0xf]
        %v431 = vld [vmem:[%s326 + $0x38] sm:$0xf]
        %v432 = vld [vmem:[%s326 + $0x3c] sm:$0xf]
        %v433 = vld [vmem:[%s335] sm:$0xf]
        %v434 = vld [vmem:[%s335 + $0x4] sm:$0xf]
        %v435 = vld [vmem:[%s335 + $0x8] sm:$0xf]
        %v436 = vld [vmem:[%s335 + $0xc] sm:$0xf]
        %v437 = vld [vmem:[%s335 + $0x10] sm:$0xf]
        %v438 = vld [vmem:[%s335 + $0x14] sm:$0xf]
        %v439 = vld [vmem:[%s335 + $0x18] sm:$0xf]
        %v440 = vld [vmem:[%s335 + $0x1c] sm:$0xf]
        %v441 = vld [vmem:[%s335 + $0x20] sm:$0xf]
        %v442 = vld [vmem:[%s335 + $0x24] sm:$0xf]
        %v443 = vld [vmem:[%s335 + $0x28] sm:$0xf]
        %v444 = vld [vmem:[%s335 + $0x2c] sm:$0xf]
        %v445 = vld [vmem:[%s335 + $0x30] sm:$0xf]
        %v446 = vld [vmem:[%s335 + $0x34] sm:$0xf]
        %v447 = vld [vmem:[%s335 + $0x38] sm:$0xf]
        %v448 = vld [vmem:[%s335 + $0x3c] sm:$0xf]
        %v465 = vunpack.c.l.b16 %v417
        %v466 = vunpack.c.l.b16 %v418
        %v467 = vunpack.c.l.b16 %v419
        %v468 = vunpack.c.l.b16 %v420
        %v469 = vunpack.c.l.b16 %v421
        %v470 = vunpack.c.l.b16 %v422
        %v471 = vunpack.c.l.b16 %v423
        %v472 = vunpack.c.l.b16 %v424
        %v473 = vunpack.c.l.b16 %v425
        %v474 = vunpack.c.l.b16 %v426
        %v475 = vunpack.c.l.b16 %v427
        %v476 = vunpack.c.l.b16 %v428
        %v477 = vunpack.c.l.b16 %v429
        %v478 = vunpack.c.l.b16 %v430
        %v479 = vunpack.c.l.b16 %v431
        %v480 = vunpack.c.l.b16 %v432
        %v481 = vpack.c.b16 %v466, %v465
        %v482 = vpack.c.b16 %v468, %v467
        %v483 = vpack.c.b16 %v470, %v469
        %v484 = vpack.c.b16 %v472, %v471
        %v485 = vpack.c.b16 %v474, %v473
        %v486 = vpack.c.b16 %v476, %v475
        %v487 = vpack.c.b16 %v478, %v477
        %v488 = vpack.c.b16 %v480, %v479
        %v513 = vunpack.c.l.b16 %v433
        %v514 = vunpack.c.l.b16 %v434
        %v515 = vunpack.c.l.b16 %v435
        %v516 = vunpack.c.l.b16 %v436
        %v517 = vunpack.c.l.b16 %v437
        %v518 = vunpack.c.l.b16 %v438
        %v519 = vunpack.c.l.b16 %v439
        %v520 = vunpack.c.l.b16 %v440
        %v521 = vunpack.c.l.b16 %v441
        %v522 = vunpack.c.l.b16 %v442
        %v523 = vunpack.c.l.b16 %v443
        %v524 = vunpack.c.l.b16 %v444
        %v525 = vunpack.c.l.b16 %v445
        %v526 = vunpack.c.l.b16 %v446
        %v527 = vunpack.c.l.b16 %v447
        %v528 = vunpack.c.l.b16 %v448
        %v529 = vpack.c.b16 %v514, %v513
        %v530 = vpack.c.b16 %v516, %v515
        %v531 = vpack.c.b16 %v518, %v517
        %v532 = vpack.c.b16 %v520, %v519
        %v533 = vpack.c.b16 %v522, %v521
        %v534 = vpack.c.b16 %v524, %v523
        %v535 = vpack.c.b16 %v526, %v525
        %v536 = vpack.c.b16 %v528, %v527
        %545 = vmatprep.subr.bf16.mxu0 0
        %546 = vmatpush1.bf16.msra.mxu0 %v536
        %547 = vmatprep.subr.bf16.mxu0 0
        %548 = vmatpush1.bf16.msra.mxu0 %v535
        %549 = vmatprep.subr.bf16.mxu0 0
        %550 = vmatpush1.bf16.msra.mxu0 %v534
        %551 = vmatprep.subr.bf16.mxu0 0
        %552 = vmatpush1.bf16.msra.mxu0 %v533
        %553 = vmatprep.subr.bf16.mxu0 0
        %554 = vmatpush1.bf16.msra.mxu0 %v532
        %555 = vmatprep.subr.bf16.mxu0 0
        %556 = vmatpush1.bf16.msra.mxu0 %v531
        %557 = vmatprep.subr.bf16.mxu0 0
        %558 = vmatpush1.bf16.msra.mxu0 %v530
        %559 = vmatprep.subr.bf16.mxu0 0
        %560 = vmatpush1.bf16.msra.mxu0 %v529
        %561 = vmatprep.subr.bf16.mxu0 0
        %562 = vmatpush2.bf16.msra.mxu0 0
        %563 = vmatprep.subr.bf16.mxu0 0
        %564 = vmatpush2.bf16.msra.mxu0 0
        %565 = vmatprep.subr.bf16.mxu0 0
        %566 = vmatpush2.bf16.msra.mxu0 0
        %567 = vmatprep.subr.bf16.mxu0 0
        %568 = vmatpush2.bf16.msra.mxu0 0
        %569 = vmatprep.subr.bf16.mxu0 0
        %570 = vmatpush2.bf16.msra.mxu0 0
        %571 = vmatprep.subr.bf16.mxu0 0
        %572 = vmatpush2.bf16.msra.mxu0 0
        %573 = vmatprep.subr.bf16.mxu0 0
        %574 = vmatpush2.bf16.msra.mxu0 0
        %575 = vmatprep.subr.bf16.mxu0 0
        %576 = vmatpush2.bf16.msra.mxu0 0
        %577 = vmatprep.mubr.bf16.mxu0 0
        %578 = vmatmul.mubr.bf16.gmra.mxu0 %v481
        %v579 = vpop.f32.mrf.mxu0
        %v580 = vadd.f32 0.0, %v579
        %v581 = vpop.f32.mrf.mxu0
        %v582 = vpop.f32.mrf.mxu0
        %v583 = vadd.f32 0.0, %v582
        %v584 = vpop.f32.mrf.mxu0
        %585 = vmatprep.mubr.bf16.mxu0 0
        %586 = vmatmul.mubr.bf16.gmra.mxu0 %v482
        %v587 = vpop.f32.mrf.mxu0
        %v588 = vadd.f32 0.0, %v587
        %v589 = vpop.f32.mrf.mxu0
        %v590 = vpop.f32.mrf.mxu0
        %v591 = vadd.f32 0.0, %v590
        %v592 = vpop.f32.mrf.mxu0
        %593 = vmatprep.mubr.bf16.mxu0 0
        %594 = vmatmul.mubr.bf16.gmra.mxu0 %v483
        %v595 = vpop.f32.mrf.mxu0
        %v596 = vadd.f32 0.0, %v595
        %v597 = vpop.f32.mrf.mxu0
        %v598 = vpop.f32.mrf.mxu0
        %v599 = vadd.f32 0.0, %v598
        %v600 = vpop.f32.mrf.mxu0
        %601 = vmatprep.mubr.bf16.mxu0 0
        %602 = vmatmul.mubr.bf16.gmra.mxu0 %v484
        %v603 = vpop.f32.mrf.mxu0
        %v604 = vadd.f32 0.0, %v603
        %v605 = vpop.f32.mrf.mxu0
        %v606 = vpop.f32.mrf.mxu0
        %v607 = vadd.f32 0.0, %v606
        %v608 = vpop.f32.mrf.mxu0
        %609 = vmatprep.mubr.bf16.mxu0 0
        %610 = vmatmul.mubr.bf16.gmra.mxu0 %v485
        %v611 = vpop.f32.mrf.mxu0
        %v612 = vadd.f32 0.0, %v611
        %v613 = vpop.f32.mrf.mxu0
        %v614 = vpop.f32.mrf.mxu0
        %v615 = vadd.f32 0.0, %v614
        %v616 = vpop.f32.mrf.mxu0
        %617 = vmatprep.mubr.bf16.mxu0 0
        %618 = vmatmul.mubr.bf16.gmra.mxu0 %v486
        %v619 = vpop.f32.mrf.mxu0
        %v620 = vadd.f32 0.0, %v619
        %v621 = vpop.f32.mrf.mxu0
        %v622 = vpop.f32.mrf.mxu0
        %v623 = vadd.f32 0.0, %v622
        %v624 = vpop.f32.mrf.mxu0
        %625 = vmatprep.mubr.bf16.mxu0 0
        %626 = vmatmul.mubr.bf16.gmra.mxu0 %v487
        %v627 = vpop.f32.mrf.mxu0
        %v628 = vadd.f32 0.0, %v627
        %v629 = vpop.f32.mrf.mxu0
        %v630 = vpop.f32.mrf.mxu0
        %v631 = vadd.f32 0.0, %v630
        %v632 = vpop.f32.mrf.mxu0
        %633 = vmatprep.mubr.bf16.mxu0 0
        %634 = vmatmul.mubr.bf16.gmra.mxu0 %v488
        %v635 = vpop.f32.mrf.mxu0
        %v636 = vadd.f32 0.0, %v635
        %v637 = vpop.f32.mrf.mxu0
        %v638 = vpop.f32.mrf.mxu0
        %v639 = vadd.f32 0.0, %v638
        %v640 = vpop.f32.mrf.mxu0
        %641 = vdwg.mxu0
        %v642 = vadd.f32 %v401, %v580
        %v643 = vadd.f32 %v402, %v583
        %v644 = vadd.f32 %v403, %v588
        %v645 = vadd.f32 %v404, %v591
        %v646 = vadd.f32 %v405, %v596
        %v647 = vadd.f32 %v406, %v599
        %v648 = vadd.f32 %v407, %v604
        %v649 = vadd.f32 %v408, %v607
        %v650 = vadd.f32 %v409, %v612
        %v651 = vadd.f32 %v410, %v615
        %v652 = vadd.f32 %v411, %v620
        %v653 = vadd.f32 %v412, %v623
        %v654 = vadd.f32 %v413, %v628
        %v655 = vadd.f32 %v414, %v631
        %v656 = vadd.f32 %v415, %v636
        %v657 = vadd.f32 %v416, %v639
        %658 = vst [vmem:[#allocation2] sm:$0xff] %v642
        %659 = vst [vmem:[#allocation2 + $0x8] sm:$0xff] %v643
        %660 = vst [vmem:[#allocation2 + $0x10] sm:$0xff] %v644
        %661 = vst [vmem:[#allocation2 + $0x18] sm:$0xff] %v645
        %662 = vst [vmem:[#allocation2 + $0x20] sm:$0xff] %v646
        %663 = vst [vmem:[#allocation2 + $0x28] sm:$0xff] %v647
        %664 = vst [vmem:[#allocation2 + $0x30] sm:$0xff] %v648
        %665 = vst [vmem:[#allocation2 + $0x38] sm:$0xff] %v649
        %666 = vst [vmem:[#allocation2 + $0x40] sm:$0xff] %v650
        %667 = vst [vmem:[#allocation2 + $0x48] sm:$0xff] %v651
        %668 = vst [vmem:[#allocation2 + $0x50] sm:$0xff] %v652
        %669 = vst [vmem:[#allocation2 + $0x58] sm:$0xff] %v653
        %670 = vst [vmem:[#allocation2 + $0x60] sm:$0xff] %v654
        %671 = vst [vmem:[#allocation2 + $0x68] sm:$0xff] %v655
        %672 = vst [vmem:[#allocation2 + $0x70] sm:$0xff] %v656
        %673 = vst [vmem:[#allocation2 + $0x78] sm:$0xff] %v657
        %p674 = scmp.eq.s32.totalorder %s34, 1
        // Predicated region
        $region65: #{tpu_custom_call.1} parent=47 // pred_check
          %p675 = pneg %p674
        $region66: #{tpu_custom_call.1} parent=47 // pred_check_branch
          %677 = sbr.rel (%p675) target = $region68
        $region67: #{tpu_custom_call.1} parent=47 // pred_region
          %v678 = vld [vmem:[#allocation2] sm:$0xff]
          %v679 = vld [vmem:[#allocation2 + $0x8] sm:$0xff]
          %v680 = vld [vmem:[#allocation2 + $0x10] sm:$0xff]
          %v681 = vld [vmem:[#allocation2 + $0x18] sm:$0xff]
          %v682 = vld [vmem:[#allocation2 + $0x20] sm:$0xff]
          %v683 = vld [vmem:[#allocation2 + $0x28] sm:$0xff]
          %v684 = vld [vmem:[#allocation2 + $0x30] sm:$0xff]
          %v685 = vld [vmem:[#allocation2 + $0x38] sm:$0xff]
          %v686 = vld [vmem:[#allocation2 + $0x40] sm:$0xff]
          %v687 = vld [vmem:[#allocation2 + $0x48] sm:$0xff]
          %v688 = vld [vmem:[#allocation2 + $0x50] sm:$0xff]
          %v689 = vld [vmem:[#allocation2 + $0x58] sm:$0xff]
          %v690 = vld [vmem:[#allocation2 + $0x60] sm:$0xff]
          %v691 = vld [vmem:[#allocation2 + $0x68] sm:$0xff]
          %v692 = vld [vmem:[#allocation2 + $0x70] sm:$0xff]
          %v693 = vld [vmem:[#allocation2 + $0x78] sm:$0xff]
          %v694 = vld [vmem:[%s2] sm:$0x1]
          %v696 = vlaneseq
          %v697 = vshrl.u32 %v696, 7
          %v698 = vsub.s32 0, %v697
          %v699 = vrot.slane %v694, %v698
          %v701 = vadd.f32 %v678, %v699
          %v702 = vadd.f32 %v679, %v699
          %v703 = vadd.f32 %v680, %v699
          %v704 = vadd.f32 %v681, %v699
          %v705 = vadd.f32 %v682, %v699
          %v706 = vadd.f32 %v683, %v699
          %v707 = vadd.f32 %v684, %v699
          %v708 = vadd.f32 %v685, %v699
          %v709 = vadd.f32 %v686, %v699
          %v710 = vadd.f32 %v687, %v699
          %v711 = vadd.f32 %v688, %v699
          %v712 = vadd.f32 %v689, %v699
          %v713 = vadd.f32 %v690, %v699
          %v714 = vadd.f32 %v691, %v699
          %v715 = vadd.f32 %v692, %v699
          %v716 = vadd.f32 %v693, %v699
          %v717 = vmax.f32 %v701, 0.0
          %v718 = vmax.f32 %v702, 0.0
          %v719 = vmax.f32 %v703, 0.0
          %v720 = vmax.f32 %v704, 0.0
          %v721 = vmax.f32 %v705, 0.0
          %v722 = vmax.f32 %v706, 0.0
          %v723 = vmax.f32 %v707, 0.0
          %v724 = vmax.f32 %v708, 0.0
          %v725 = vmax.f32 %v709, 0.0
          %v726 = vmax.f32 %v710, 0.0
          %v727 = vmax.f32 %v711, 0.0
          %v728 = vmax.f32 %v712, 0.0
          %v729 = vmax.f32 %v713, 0.0
          %v730 = vmax.f32 %v714, 0.0
          %v731 = vmax.f32 %v715, 0.0
          %v732 = vmax.f32 %v716, 0.0
          %v733 = vpack.c.bf16 %v718, %v717
          %v734 = vpack.c.bf16 %v720, %v719
          %v735 = vpack.c.bf16 %v722, %v721
          %v736 = vpack.c.bf16 %v724, %v723
          %v737 = vpack.c.bf16 %v726, %v725
          %v738 = vpack.c.bf16 %v728, %v727
          %v739 = vpack.c.bf16 %v730, %v729
          %v740 = vpack.c.bf16 %v732, %v731
          %v741 = vld [vmem:[#allocation9] sm:$0xf]
          %v742 = vld [vmem:[#allocation9 + $0x4] sm:$0xf]
          %v743 = vld [vmem:[#allocation9 + $0x8] sm:$0xf]
          %v744 = vld [vmem:[#allocation9 + $0xc] sm:$0xf]
          %v745 = vld [vmem:[#allocation9 + $0x10] sm:$0xf]
          %v746 = vld [vmem:[#allocation9 + $0x14] sm:$0xf]
          %v747 = vld [vmem:[#allocation9 + $0x18] sm:$0xf]
          %v748 = vld [vmem:[#allocation9 + $0x1c] sm:$0xf]
          %v749 = vld [vmem:[#allocation9 + $0x20] sm:$0xf]
          %v750 = vld [vmem:[#allocation9 + $0x24] sm:$0xf]
          %v751 = vld [vmem:[#allocation9 + $0x28] sm:$0xf]
          %v752 = vld [vmem:[#allocation9 + $0x2c] sm:$0xf]
          %v753 = vld [vmem:[#allocation9 + $0x30] sm:$0xf]
          %v754 = vld [vmem:[#allocation9 + $0x34] sm:$0xf]
          %v755 = vld [vmem:[#allocation9 + $0x38] sm:$0xf]
          %v756 = vld [vmem:[#allocation9 + $0x3c] sm:$0xf]
          %v757 = vld [vmem:[%s4] sm:$0x1]
          %v759 = vlaneseq
          %v760 = vshrl.u32 %v759, 7
          %v761 = vsub.s32 0, %v760
          %v762 = vrot.slane %v757, %v761
          %v780 = vunpack.c.l.b16 %v741
          %v781 = vunpack.c.l.b16 %v742
          %v782 = vunpack.c.l.b16 %v743
          %v783 = vunpack.c.l.b16 %v744
          %v784 = vunpack.c.l.b16 %v745
          %v785 = vunpack.c.l.b16 %v746
          %v786 = vunpack.c.l.b16 %v747
          %v787 = vunpack.c.l.b16 %v748
          %v788 = vunpack.c.l.b16 %v749
          %v789 = vunpack.c.l.b16 %v750
          %v790 = vunpack.c.l.b16 %v751
          %v791 = vunpack.c.l.b16 %v752
          %v792 = vunpack.c.l.b16 %v753
          %v793 = vunpack.c.l.b16 %v754
          %v794 = vunpack.c.l.b16 %v755
          %v795 = vunpack.c.l.b16 %v756
          %v796 = vpack.c.b16 %v781, %v780
          %v797 = vpack.c.b16 %v783, %v782
          %v798 = vpack.c.b16 %v785, %v784
          %v799 = vpack.c.b16 %v787, %v786
          %v800 = vpack.c.b16 %v789, %v788
          %v801 = vpack.c.b16 %v791, %v790
          %v802 = vpack.c.b16 %v793, %v792
          %v803 = vpack.c.b16 %v795, %v794
          %812 = vmatprep.subr.bf16.mxu0 0
          %813 = vmatpush1.bf16.msra.mxu0 %v803
          %814 = vmatprep.subr.bf16.mxu0 0
          %815 = vmatpush1.bf16.msra.mxu0 %v802
          %816 = vmatprep.subr.bf16.mxu0 0
          %817 = vmatpush1.bf16.msra.mxu0 %v801
          %818 = vmatprep.subr.bf16.mxu0 0
          %819 = vmatpush1.bf16.msra.mxu0 %v800
          %820 = vmatprep.subr.bf16.mxu0 0
          %821 = vmatpush1.bf16.msra.mxu0 %v799
          %822 = vmatprep.subr.bf16.mxu0 0
          %823 = vmatpush1.bf16.msra.mxu0 %v798
          %824 = vmatprep.subr.bf16.mxu0 0
          %825 = vmatpush1.bf16.msra.mxu0 %v797
          %826 = vmatprep.subr.bf16.mxu0 0
          %827 = vmatpush1.bf16.msra.mxu0 %v796
          %828 = vmatprep.subr.bf16.mxu0 0
          %829 = vmatpush2.bf16.msra.mxu0 0
          %830 = vmatprep.subr.bf16.mxu0 0
          %831 = vmatpush2.bf16.msra.mxu0 0
          %832 = vmatprep.subr.bf16.mxu0 0
          %833 = vmatpush2.bf16.msra.mxu0 0
          %834 = vmatprep.subr.bf16.mxu0 0
          %835 = vmatpush2.bf16.msra.mxu0 0
          %836 = vmatprep.subr.bf16.mxu0 0
          %837 = vmatpush2.bf16.msra.mxu0 0
          %838 = vmatprep.subr.bf16.mxu0 0
          %839 = vmatpush2.bf16.msra.mxu0 0
          %840 = vmatprep.subr.bf16.mxu0 0
          %841 = vmatpush2.bf16.msra.mxu0 0
          %842 = vmatprep.subr.bf16.mxu0 0
          %843 = vmatpush2.bf16.msra.mxu0 0
          %844 = vmatprep.mubr.bf16.mxu0 0
          %845 = vmatmul.mubr.bf16.gmra.mxu0 %v733
          %v846 = vpop.f32.mrf.mxu0
          %v847 = vadd.f32 %v762, %v846
          %v848 = vpop.f32.mrf.mxu0
          %v849 = vpop.f32.mrf.mxu0
          %v850 = vadd.f32 %v762, %v849
          %v851 = vpop.f32.mrf.mxu0
          %852 = vmatprep.mubr.bf16.mxu0 0
          %853 = vmatmul.mubr.bf16.gmra.mxu0 %v734
          %v854 = vpop.f32.mrf.mxu0
          %v855 = vadd.f32 %v762, %v854
          %v856 = vpop.f32.mrf.mxu0
          %v857 = vpop.f32.mrf.mxu0
          %v858 = vadd.f32 %v762, %v857
          %v859 = vpop.f32.mrf.mxu0
          %860 = vmatprep.mubr.bf16.mxu0 0
          %861 = vmatmul.mubr.bf16.gmra.mxu0 %v735
          %v862 = vpop.f32.mrf.mxu0
          %v863 = vadd.f32 %v762, %v862
          %v864 = vpop.f32.mrf.mxu0
          %v865 = vpop.f32.mrf.mxu0
          %v866 = vadd.f32 %v762, %v865
          %v867 = vpop.f32.mrf.mxu0
          %868 = vmatprep.mubr.bf16.mxu0 0
          %869 = vmatmul.mubr.bf16.gmra.mxu0 %v736
          %v870 = vpop.f32.mrf.mxu0
          %v871 = vadd.f32 %v762, %v870
          %v872 = vpop.f32.mrf.mxu0
          %v873 = vpop.f32.mrf.mxu0
          %v874 = vadd.f32 %v762, %v873
          %v875 = vpop.f32.mrf.mxu0
          %876 = vmatprep.mubr.bf16.mxu0 0
          %877 = vmatmul.mubr.bf16.gmra.mxu0 %v737
          %v878 = vpop.f32.mrf.mxu0
          %v879 = vadd.f32 %v762, %v878
          %v880 = vpop.f32.mrf.mxu0
          %v881 = vpop.f32.mrf.mxu0
          %v882 = vadd.f32 %v762, %v881
          %v883 = vpop.f32.mrf.mxu0
          %884 = vmatprep.mubr.bf16.mxu0 0
          %885 = vmatmul.mubr.bf16.gmra.mxu0 %v738
          %v886 = vpop.f32.mrf.mxu0
          %v887 = vadd.f32 %v762, %v886
          %v888 = vpop.f32.mrf.mxu0
          %v889 = vpop.f32.mrf.mxu0
          %v890 = vadd.f32 %v762, %v889
          %v891 = vpop.f32.mrf.mxu0
          %892 = vmatprep.mubr.bf16.mxu0 0
          %893 = vmatmul.mubr.bf16.gmra.mxu0 %v739
          %v894 = vpop.f32.mrf.mxu0
          %v895 = vadd.f32 %v762, %v894
          %v896 = vpop.f32.mrf.mxu0
          %v897 = vpop.f32.mrf.mxu0
          %v898 = vadd.f32 %v762, %v897
          %v899 = vpop.f32.mrf.mxu0
          %900 = vmatprep.mubr.bf16.mxu0 0
          %901 = vmatmul.mubr.bf16.gmra.mxu0 %v740
          %v902 = vpop.f32.mrf.mxu0
          %v903 = vadd.f32 %v762, %v902
          %v904 = vpop.f32.mrf.mxu0
          %v905 = vpop.f32.mrf.mxu0
          %v906 = vadd.f32 %v762, %v905
          %v907 = vpop.f32.mrf.mxu0
          %908 = vdwg.mxu0
          %v909 = vmax.f32 %v847, 0.0
          %v910 = vmax.f32 %v850, 0.0
          %v911 = vmax.f32 %v855, 0.0
          %v912 = vmax.f32 %v858, 0.0
          %v913 = vmax.f32 %v863, 0.0
          %v914 = vmax.f32 %v866, 0.0
          %v915 = vmax.f32 %v871, 0.0
          %v916 = vmax.f32 %v874, 0.0
          %v917 = vmax.f32 %v879, 0.0
          %v918 = vmax.f32 %v882, 0.0
          %v919 = vmax.f32 %v887, 0.0
          %v920 = vmax.f32 %v890, 0.0
          %v921 = vmax.f32 %v895, 0.0
          %v922 = vmax.f32 %v898, 0.0
          %v923 = vmax.f32 %v903, 0.0
          %v924 = vmax.f32 %v906, 0.0
          %v925 = vld [vmem:[%s5] sm:$0x1]
          %v926 = vpack.c.bf16 %v910, %v909
          %v927 = vpack.c.bf16 %v912, %v911
          %v928 = vpack.c.bf16 %v914, %v913
          %v929 = vpack.c.bf16 %v916, %v915
          %v930 = vpack.c.bf16 %v918, %v917
          %v931 = vpack.c.bf16 %v920, %v919
          %v932 = vpack.c.bf16 %v922, %v921
          %v933 = vpack.c.bf16 %v924, %v923
          %v934 = vld [vmem:[#allocation3] sm:$0x1]
          %936 = vset.pattern.permute.xlu0 0
          %937 = vperm.xlu0 %936, %v934
          %v938 = vpop.permute.xlu0 %937
          %v940 = vlaneseq
          %v941 = vshrl.u32 %v940, 7
          %v942 = vsub.s32 0, %v941
          %v943 = vrot.slane %v938, %v942
          %944 = vmatprep.subr.bf16.mxu0 0
          %945 = vmatpush1.bf16.xpose.msra.mxu0 %v933
          %946 = vmatprep.subr.bf16.mxu0 0
          %947 = vmatpush1.bf16.xpose.msra.mxu0 %v932
          %948 = vmatprep.subr.bf16.mxu0 0
          %949 = vmatpush1.bf16.xpose.msra.mxu0 %v931
          %950 = vmatprep.subr.bf16.mxu0 0
          %951 = vmatpush1.bf16.xpose.msra.mxu0 %v930
          %952 = vmatprep.subr.bf16.mxu0 0
          %953 = vmatpush1.bf16.xpose.msra.mxu0 %v929
          %954 = vmatprep.subr.bf16.mxu0 0
          %955 = vmatpush1.bf16.xpose.msra.mxu0 %v928
          %956 = vmatprep.subr.bf16.mxu0 0
          %957 = vmatpush1.bf16.xpose.msra.mxu0 %v927
          %958 = vmatprep.subr.bf16.mxu0 0
          %959 = vmatpush1.bf16.xpose.msra.mxu0 %v926
          %960 = vmatprep.subr.bf16.mxu0 0
          %961 = vmatpush2.bf16.xpose.msra.mxu0 0
          %962 = vmatprep.subr.bf16.mxu0 0
          %963 = vmatpush2.bf16.xpose.msra.mxu0 0
          %964 = vmatprep.subr.bf16.mxu0 0
          %965 = vmatpush2.bf16.xpose.msra.mxu0 0
          %966 = vmatprep.subr.bf16.mxu0 0
          %967 = vmatpush2.bf16.xpose.msra.mxu0 0
          %968 = vmatprep.subr.bf16.mxu0 0
          %969 = vmatpush2.bf16.xpose.msra.mxu0 0
          %970 = vmatprep.subr.bf16.mxu0 0
          %971 = vmatpush2.bf16.xpose.msra.mxu0 0
          %972 = vmatprep.subr.bf16.mxu0 0
          %973 = vmatpush2.bf16.xpose.msra.mxu0 0
          %974 = vmatprep.subr.bf16.mxu0 0
          %975 = vmatpush2.bf16.xpose.msra.mxu0 0
          %976 = vmatprep.mubr.bf16.mxu0 0
          %977 = vmatmul.mubr.bf16.gmra.mxu0 %v925
          %v978 = vpop.f32.mrf.mxu0
          %v979 = vadd.f32 %v943, %v978
          %v980 = vpop.f32.mrf.mxu0
          %v981 = vpop.f32.mrf.mxu0
          %v982 = vpop.f32.mrf.mxu0
          %983 = vdwg.mxu0
          %v984 = vxor.u32 %v979, 2147483648
          %v985 = vmul.f32 %v984, 1.442695
          %v986 = vpow.pop %v985
          %v987 = vadd.f32 %v986, 1.0
          %v988 = vrcp.pop %v987
          %v989 = vmul.f32 1.0, %v988
          %990 = vst [vmem:[%s373] sm:$0x1] %v989
        $region68: #{tpu_custom_call.1} parent=47 // pred_fallthru
          _
        %s991 = sand.u32 %s208, 1
        %s992 = scalar_lea.sflag [#allocation6], %s991
        %s993 = sand.u32 %s208, 1
        %s994 = scalar_lea.vmem [#allocation10], %s993
        // Predicated region
        $region69: #{tpu_custom_call.1} parent=47 // pred_check
          %p995 = pneg %p218
        $region70: #{tpu_custom_call.1} parent=47 // pred_check_branch
          %997 = sbr.rel (%p995) target = $region72
        $region71: #{tpu_custom_call.1} parent=47 // pred_region
          %s999 = ssub.s32 16, 16
          %1000 = vsyncadd %s992, %s999
          %s1001 = smul.addr %s33, 16
          %s1002 = scalar_lea.hbm %s7, %s1001
          %s1004 = sshll.u32 %s994, 4
          %s1005 = int_to_ptr.vmem [resolvable:$true] %s1004
          %1007 = dma.vmem_to_hbm [thread:$0]  %s1005, 16, %s1002, %s992
        $region72: #{tpu_custom_call.1} parent=47 // pred_fallthru
          _
      $region48: #{tpu_custom_call.1} parent=5 // pred_fallthru
        _
      %p1008 = scmp.le.s32.totalorder 2, %s24
      // Predicated region
      $region73: #{tpu_custom_call.1} parent=5 // pred_check
        %p1009 = pneg %p1008
      $region74: #{tpu_custom_call.1} parent=5 // pred_check_branch
        %1011 = sbr.rel (%p1009) target = $region76
      $region75: #{tpu_custom_call.1} parent=5 // pred_region
        %s1012 = ssub.s32 %s24, 2
        // Predicated region
        $region77: #{tpu_custom_call.1} parent=75 // pred_check
          %p1013 = pneg %p224
        $region78: #{tpu_custom_call.1} parent=75 // pred_check_branch
          %1015 = sbr.rel (%p1013) target = $region80
        $region79: #{tpu_custom_call.1} parent=75 // pred_region
          %s1016 = sand.u32 %s209, 1
          %s1017 = scalar_lea.sflag [#allocation6], %s1016
          %s1018 = sand.u32 %s209, 1
          %s1019 = scalar_lea.vmem [#allocation10], %s1018
          %1020 = dma.done %s1017, 16
        $region80: #{tpu_custom_call.1} parent=75 // pred_fallthru
          _
      $region76: #{tpu_custom_call.1} parent=5 // pred_fallthru
        _
    $region6: #{tpu_custom_call.1} parent=1 // loop_footer
      %s28 = sadd.s32 1, %s24
    $region7: #{tpu_custom_call.1} parent=1 // loop_footer_branch
      %23 = sbr.rel target = $region3
    $region8: #{tpu_custom_call.1} parent=1 // loop_exit
      _
    %1021 = vsyncpa [#allocation5], 1
    %s1022 = scalar_lea.sflag [#allocation5], 1
    %1023 = vsyncpa %s1022, 1
    %1024 = vsyncpa [#allocation8], 1
    %s1025 = scalar_lea.sflag [#allocation8], 1
    %1026 = vsyncpa %s1025, 1
    %1027 = vsyncpa [#allocation6], 1
    %s1028 = scalar_lea.sflag [#allocation6], 1
    %1029 = vsyncpa %s1028, 1

</llo_original>
